<compile_context>
chip_gen: v6e
topology: v6e:2x2x1
jax: 0.10.0
libtpu: 0.0.40
codegen_flags: <defaults>
</compile_context>

<pallas_src>
import jax
import jax.numpy as jnp
from jax.experimental import pallas as pl
from jax.experimental.pallas import tpu as pltpu


# ----------------------------- Pallas kernel ------------------------------- #
def make_neumf_kernel(num_fc_layers, dmlp, dmf):
    """Kernel for a NeuMF tower with `num_fc_layers` fc layers.

    Ref order (all feature-major, batch on the lane axis):
      u_act (dmlp+dmf, TB)   rows [0:dmlp] = user MLP emb, [dmlp:] = user MF emb
      i_act (dmlp+dmf, TB)   same layout for the item embeddings
      W1u^T (h1, dmlp), W1i^T (h1, dmlp), b1^T (h1, 1),
      [W_l^T (h_l, h_{l-1}), b_l^T (h_l, 1)] * (num_fc_layers - 1),
      WaH^T (1, h_last), WaMF^T (1, dmf), ba^T (1, 1),
      out (1, TB)
    """

    def kernel(*refs):
        out_ref = refs[-1]
        u_ref, i_ref = refs[0], refs[1]
        idx = 2

        u = u_ref[...]
        it = i_ref[...]
        u_mlp, u_mf = u[:dmlp, :], u[dmlp:, :]
        i_mlp, i_mf = it[:dmlp, :], it[dmlp:, :]

        # Layer 1: concat(u_mlp, i_mlp) @ W1  ->  split matmul (no concat).
        w1u_ref, w1i_ref, b1_ref = refs[idx:idx + 3]
        idx += 3
        h = jnp.dot(w1u_ref[...], u_mlp, preferred_element_type=jnp.float32)
        h = h + jnp.dot(w1i_ref[...], i_mlp,
                        preferred_element_type=jnp.float32)
        h = jnp.maximum(h + b1_ref[...], 0.0)

        # Remaining fc layers.
        for _ in range(num_fc_layers - 1):
            w_ref, b_ref = refs[idx:idx + 2]
            idx += 2
            h = jnp.maximum(
                jnp.dot(w_ref[...], h, preferred_element_type=jnp.float32)
                + b_ref[...], 0.0)

        # GMF tower: element-wise product (lane-dense VPU op).
        mf = u_mf * i_mf

        # Final affine: concat(h, mf) @ Wa  ->  split matmul, then sigmoid.
        wah_ref, wam_ref, ba_ref = refs[idx:idx + 3]
        logits = jnp.dot(wah_ref[...], h, preferred_element_type=jnp.float32)
        logits = logits + jnp.dot(wam_ref[...], mf,
                                  preferred_element_type=jnp.float32)
        out_ref[...] = jax.nn.sigmoid(logits + ba_ref[...])

    return kernel


# ------------------------------ JAX wrapper -------------------------------- #
def _round_up(x, m):
    return ((x + m - 1) // m) * m


def prepare_neumf_params(params, config):
    """One-time layout prep: feature-major (stacked) embedding tables and
    transposed / split weights, so the per-call path never materializes a
    transpose in HBM."""
    dmlp = config["latent_dim_mlp"]
    layers = config["layers"]
    n_fc = len(layers) - 1
    w1 = params["fc_w"][0]
    wa = params["wa"]
    return {
        # (dmlp+dmf, num_rows): gather along axis 1 emits (feat, B) directly.
        "user_table_t": jnp.concatenate(
            [params["emb_user_mlp"].T, params["emb_user_mf"].T], axis=0),
        "item_table_t": jnp.concatenate(
            [params["emb_item_mlp"].T, params["emb_item_mf"].T], axis=0),
        "w1u_t": w1[:dmlp, :].T,
        "w1i_t": w1[dmlp:, :].T,
        "b1_t": params["fc_b"][0].T,
        "fc_w_t": [params["fc_w"][li].T for li in range(1, n_fc)],
        "fc_b_t": [params["fc_b"][li].T for li in range(1, n_fc)],
        "wah_t": wa[:layers[-1], :].T,
        "wam_t": wa[layers[-1]:, :].T,
        "ba_t": params["ba"].T,
    }


def neumf_forward(user_indices, item_indices, prep, config,
                  tile_b=8192, vmem_budget_bytes=40 << 20):
    """Embedding gathers (feature-major, no transpose) in plain JAX; the whole
    MLP/GMF/affine/sigmoid path runs inside one batch-tiled, pipelined Pallas
    kernel."""
    dmlp = config["latent_dim_mlp"]
    dmf = config["latent_dim_mf"]
    layers = config["layers"]
    n_fc = len(layers) - 1
    assert layers[0] == 2 * dmlp, "layers[0] must equal 2 * latent_dim_mlp"

    B = int(user_indices.shape[0])
    feat = dmlp + dmf

    # ---- tile sizing from a VMEM budget (the binding constraint is v7x's
    # 64 MiB physical VMEM and v5e's 16 MiB default scoped limit, not v6e).
    max_w = max(layers[1:])
    per_col = 4 * (2 * 2 * feat    # two stacked inputs, double-buffered
                   + 2 * 8         # output row (sublane-padded), double-buffered
                   + 2 * max_w)    # live activation slabs
    cap = max(128, (vmem_budget_bytes // per_col) // 128 * 128)
    tile_b = max(128, _round_up(tile_b, 128))       # always a multiple of 128
    tile_b = min(tile_b, cap, _round_up(B, 128))
    b_pad = _round_up(B, tile_b)

    if b_pad != B:
        user_indices = jnp.pad(user_indices, (0, b_pad - B))
        item_indices = jnp.pad(item_indices, (0, b_pad - B))

    # Feature-major gathers: (feat, b_pad), batch on the lane axis, no .T copy.
    u_act = prep["user_table_t"][:, user_indices]
    i_act = prep["item_table_t"][:, item_indices]

    weight_args = [prep["w1u_t"], prep["w1i_t"], prep["b1_t"]]
    for w_t, b_t in zip(prep["fc_w_t"], prep["fc_b_t"]):
        weight_args += [w_t, b_t]
    weight_args += [prep["wah_t"], prep["wam_t"], prep["ba_t"]]

    def batch_spec(arr):
        return pl.BlockSpec((arr.shape[0], tile_b), lambda i: (0, i))

    def resident_spec(arr):
        # Full-array block, constant index_map -> stays resident in VMEM.
        return pl.BlockSpec(arr.shape, lambda i: (0, 0))

    in_specs = ([batch_spec(u_act), batch_spec(i_act)]
                + [resident_spec(a) for a in weight_args])

    # Raise the scoped-VMEM limit to cover the bigger tiles (v5e defaults to
    # only 16 MiB); keep it well under v7x's 64 MiB physical VMEM.
    weight_bytes = sum(
        _round_up(a.shape[0], 8) * _round_up(a.shape[1], 128) * 4
        for a in weight_args) * 2
    need = per_col * tile_b + weight_bytes
    vmem_limit = int(max(32 << 20, min(need + (8 << 20), 112 << 20)))

    out_t = pl.pallas_call(
        make_neumf_kernel(n_fc, dmlp, dmf),
        out_shape=jax.ShapeDtypeStruct((1, b_pad), jnp.float32),
        grid=(b_pad // tile_b,),
        in_specs=in_specs,
        out_specs=pl.BlockSpec((1, tile_b), lambda i: (0, i)),
        compiler_params=pltpu.CompilerParams(
            dimension_semantics=("parallel",),
            vmem_limit_bytes=vmem_limit,
        ),
    )(u_act, i_act, *weight_args)

    return out_t[0, :B].reshape(B, 1)


# ----------------------- deterministic param init -------------------------- #
def init_params(config, key):
    layers = config["layers"]
    n_fc = len(layers) - 1
    ks = jax.random.split(key, 4 + n_fc + 1)
    dmlp = config["latent_dim_mlp"]
    dmf = config["latent_dim_mf"]

    def lin(k, n_in, n_out):
        kw, kb = jax.random.split(k)
        s = 1.0 / jnp.sqrt(n_in)
        w = jax.random.uniform(kw, (n_in, n_out), jnp.float32, -s, s)
        b = jax.random.uniform(kb, (1, n_out), jnp.float32, -s, s)
        return w, b

    params = {
        "emb_user_mlp": jax.random.normal(
            ks[0], (config["num_users"], dmlp), jnp.float32) * 0.01,
        "emb_item_mlp": jax.random.normal(
            ks[1], (config["num_items"], dmlp), jnp.float32) * 0.01,
        "emb_user_mf": jax.random.normal(
            ks[2], (config["num_users"], dmf), jnp.float32) * 0.01,
        "emb_item_mf": jax.random.normal(
            ks[3], (config["num_items"], dmf), jnp.float32) * 0.01,
        "fc_w": [], "fc_b": [],
    }
    for li in range(n_fc):
        w, b = lin(ks[4 + li], layers[li], layers[li + 1])
        params["fc_w"].append(w)
        params["fc_b"].append(b)
    wa, ba = lin(ks[4 + n_fc], layers[-1] + dmf, 1)
    params["wa"] = wa
    params["ba"] = ba
    return params


# pure-JAX reference for a correctness sanity check
def neumf_ref(user_indices, item_indices, params):
    u_mlp = params["emb_user_mlp"][user_indices]
    i_mlp = params["emb_item_mlp"][item_indices]
    u_mf = params["emb_user_mf"][user_indices]
    i_mf = params["emb_item_mf"][item_indices]
    h = jnp.concatenate([u_mlp, i_mlp], axis=-1)
    for w, b in zip(params["fc_w"], params["fc_b"]):
        h = jnp.maximum(h @ w + b, 0.0)
    vec = jnp.concatenate([h, u_mf * i_mf], axis=-1)
    return jax.nn.sigmoid(vec @ params["wa"] + params["ba"])


if __name__ == "__main__":
    config = {
        "num_users": 32,
        "num_items": 32,
        "latent_dim_mf": 8,
        "latent_dim_mlp": 8,
        "layers": [16, 32, 16, 8],   # layers[0] == 2 * latent_dim_mlp
    }
    key = jax.random.PRNGKey(0)
    kp, ku, ki = jax.random.split(key, 3)
    params = init_params(config, kp)
    prep = prepare_neumf_params(params, config)   # one-time layout prep

    B = 8
    user_idx = jax.random.randint(ku, (B,), 0, config["num_users"],
                                  dtype=jnp.int32)
    item_idx = jax.random.randint(ki, (B,), 0, config["num_items"],
                                  dtype=jnp.int32)

    fwd = jax.jit(lambda u, i, p: neumf_forward(u, i, p, config))
    out = jax.block_until_ready(fwd(user_idx, item_idx, prep))

    ref = neumf_ref(user_idx, item_idx, params)
    assert out.shape == (B, 1)
    assert jnp.allclose(out, ref, atol=1e-5, rtol=1e-5)
    print("KERNEL_OK")
</pallas_src>

<mosaic_0001>
module attributes {stable_mosaic.version = 11 : i64} {
  func.func @kernel(%arg0: i32, %arg1: memref<16x128xf32, #tpu.memory_space<vmem>>, %arg2: memref<16x128xf32, #tpu.memory_space<vmem>>, %arg3: memref<32x8xf32, #tpu.memory_space<vmem>>, %arg4: memref<32x8xf32, #tpu.memory_space<vmem>>, %arg5: memref<32x1xf32, #tpu.memory_space<vmem>>, %arg6: memref<16x32xf32, #tpu.memory_space<vmem>>, %arg7: memref<16x1xf32, #tpu.memory_space<vmem>>, %arg8: memref<8x16xf32, #tpu.memory_space<vmem>>, %arg9: memref<8x1xf32, #tpu.memory_space<vmem>>, %arg10: memref<1x8xf32, #tpu.memory_space<vmem>>, %arg11: memref<1x8xf32, #tpu.memory_space<vmem>>, %arg12: memref<1x1xf32, #tpu.memory_space<vmem>>, %arg13: memref<1x128xf32, #tpu.memory_space<vmem>>) attributes {dimension_semantics = [#tpu.dimension_semantics<parallel>], iteration_bounds = array<i64: 1>, scalar_prefetch = 0 : i64, scratch_operands = 0 : i64, tpu.core_type = #tpu.core_type<tc>, window_params = [{transform_indices = @transform_0, window_bounds = array<i64: 16, 128>}, {transform_indices = @transform_1, window_bounds = array<i64: 16, 128>}, {pipeline_mode = #tpu.pipeline_mode<synchronous>, transform_indices = @transform_2, window_bounds = array<i64: 32, 8>}, {pipeline_mode = #tpu.pipeline_mode<synchronous>, transform_indices = @transform_3, window_bounds = array<i64: 32, 8>}, {pipeline_mode = #tpu.pipeline_mode<synchronous>, transform_indices = @transform_4, window_bounds = array<i64: 32, 1>}, {pipeline_mode = #tpu.pipeline_mode<synchronous>, transform_indices = @transform_5, window_bounds = array<i64: 16, 32>}, {pipeline_mode = #tpu.pipeline_mode<synchronous>, transform_indices = @transform_6, window_bounds = array<i64: 16, 1>}, {pipeline_mode = #tpu.pipeline_mode<synchronous>, transform_indices = @transform_7, window_bounds = array<i64: 8, 16>}, {pipeline_mode = #tpu.pipeline_mode<synchronous>, transform_indices = @transform_8, window_bounds = array<i64: 8, 1>}, {pipeline_mode = #tpu.pipeline_mode<synchronous>, transform_indices = @transform_9, window_bounds = array<i64: 1, 8>}, {pipeline_mode = #tpu.pipeline_mode<synchronous>, transform_indices = @transform_10, window_bounds = array<i64: 1, 8>}, {pipeline_mode = #tpu.pipeline_mode<synchronous>, transform_indices = @transform_11, window_bounds = array<i64: 1, 1>}, {transform_indices = @transform_12, window_bounds = array<i64: 1, 128>}]} {
    %c0 = arith.constant 0 : index
    %c0_0 = arith.constant 0 : index
    %0 = vector.load %arg1[%c0, %c0_0] : memref<16x128xf32, #tpu.memory_space<vmem>>, vector<16x128xf32>
    %c0_1 = arith.constant 0 : index
    %c0_2 = arith.constant 0 : index
    %1 = vector.load %arg2[%c0_1, %c0_2] : memref<16x128xf32, #tpu.memory_space<vmem>>, vector<16x128xf32>
    %2 = vector.extract_strided_slice %0 {offsets = [0, 0], sizes = [8, 128], strides = [1, 1]} : vector<16x128xf32> to vector<8x128xf32>
    %3 = vector.extract_strided_slice %0 {offsets = [8, 0], sizes = [8, 128], strides = [1, 1]} : vector<16x128xf32> to vector<8x128xf32>
    %4 = vector.extract_strided_slice %1 {offsets = [0, 0], sizes = [8, 128], strides = [1, 1]} : vector<16x128xf32> to vector<8x128xf32>
    %5 = vector.extract_strided_slice %1 {offsets = [8, 0], sizes = [8, 128], strides = [1, 1]} : vector<16x128xf32> to vector<8x128xf32>
    %c0_3 = arith.constant 0 : index
    %c0_4 = arith.constant 0 : index
    %6 = vector.load %arg3[%c0_3, %c0_4] : memref<32x8xf32, #tpu.memory_space<vmem>>, vector<32x8xf32>
    %cst = arith.constant dense<0.000000e+00> : vector<32x128xf32>
    %7 = tpu.matmul %6, %2, %cst {dimension_numbers = #tpu.dot_dimension_numbers<[1], [0], [0], [1], [0, 0, 1, 1], [], []>} : vector<32x8xf32>, vector<8x128xf32>, vector<32x128xf32> -> vector<32x128xf32>
    %c0_5 = arith.constant 0 : index
    %c0_6 = arith.constant 0 : index
    %8 = vector.load %arg4[%c0_5, %c0_6] : memref<32x8xf32, #tpu.memory_space<vmem>>, vector<32x8xf32>
    %cst_7 = arith.constant dense<0.000000e+00> : vector<32x128xf32>
    %9 = tpu.matmul %8, %4, %cst_7 {dimension_numbers = #tpu.dot_dimension_numbers<[1], [0], [0], [1], [0, 0, 1, 1], [], []>} : vector<32x8xf32>, vector<8x128xf32>, vector<32x128xf32> -> vector<32x128xf32>
    %10 = arith.addf %7, %9 : vector<32x128xf32>
    %c0_8 = arith.constant 0 : index
    %c0_9 = arith.constant 0 : index
    %11 = vector.load %arg5[%c0_8, %c0_9] : memref<32x1xf32, #tpu.memory_space<vmem>>, vector<32x1xf32>
    %12 = vector.broadcast %11 : vector<32x1xf32> to vector<32x128xf32>
    %13 = arith.addf %10, %12 : vector<32x128xf32>
    %cst_10 = arith.constant 0.000000e+00 : f32
    %14 = vector.broadcast %cst_10 : f32 to vector<32x128xf32>
    %15 = arith.maximumf %13, %14 : vector<32x128xf32>
    %c0_11 = arith.constant 0 : index
    %c0_12 = arith.constant 0 : index
    %16 = vector.load %arg6[%c0_11, %c0_12] : memref<16x32xf32, #tpu.memory_space<vmem>>, vector<16x32xf32>
    %cst_13 = arith.constant dense<0.000000e+00> : vector<16x128xf32>
    %17 = tpu.matmul %16, %15, %cst_13 {dimension_numbers = #tpu.dot_dimension_numbers<[1], [0], [0], [1], [0, 0, 1, 1], [], []>} : vector<16x32xf32>, vector<32x128xf32>, vector<16x128xf32> -> vector<16x128xf32>
    %c0_14 = arith.constant 0 : index
    %c0_15 = arith.constant 0 : index
    %18 = vector.load %arg7[%c0_14, %c0_15] : memref<16x1xf32, #tpu.memory_space<vmem>>, vector<16x1xf32>
    %19 = vector.broadcast %18 : vector<16x1xf32> to vector<16x128xf32>
    %20 = arith.addf %17, %19 : vector<16x128xf32>
    %cst_16 = arith.constant 0.000000e+00 : f32
    %21 = vector.broadcast %cst_16 : f32 to vector<16x128xf32>
    %22 = arith.maximumf %20, %21 : vector<16x128xf32>
    %c0_17 = arith.constant 0 : index
    %c0_18 = arith.constant 0 : index
    %23 = vector.load %arg8[%c0_17, %c0_18] : memref<8x16xf32, #tpu.memory_space<vmem>>, vector<8x16xf32>
    %cst_19 = arith.constant dense<0.000000e+00> : vector<8x128xf32>
    %24 = tpu.matmul %23, %22, %cst_19 {dimension_numbers = #tpu.dot_dimension_numbers<[1], [0], [0], [1], [0, 0, 1, 1], [], []>} : vector<8x16xf32>, vector<16x128xf32>, vector<8x128xf32> -> vector<8x128xf32>
    %c0_20 = arith.constant 0 : index
    %c0_21 = arith.constant 0 : index
    %25 = vector.load %arg9[%c0_20, %c0_21] : memref<8x1xf32, #tpu.memory_space<vmem>>, vector<8x1xf32>
    %26 = vector.broadcast %25 : vector<8x1xf32> to vector<8x128xf32>
    %27 = arith.addf %24, %26 : vector<8x128xf32>
    %cst_22 = arith.constant 0.000000e+00 : f32
    %28 = vector.broadcast %cst_22 : f32 to vector<8x128xf32>
    %29 = arith.maximumf %27, %28 : vector<8x128xf32>
    %30 = arith.mulf %3, %5 : vector<8x128xf32>
    %c0_23 = arith.constant 0 : index
    %c0_24 = arith.constant 0 : index
    %31 = vector.load %arg10[%c0_23, %c0_24] : memref<1x8xf32, #tpu.memory_space<vmem>>, vector<1x8xf32>
    %cst_25 = arith.constant dense<0.000000e+00> : vector<1x128xf32>
    %32 = tpu.matmul %31, %29, %cst_25 {dimension_numbers = #tpu.dot_dimension_numbers<[1], [0], [0], [1], [0, 0, 1, 1], [], []>} : vector<1x8xf32>, vector<8x128xf32>, vector<1x128xf32> -> vector<1x128xf32>
    %c0_26 = arith.constant 0 : index
    %c0_27 = arith.constant 0 : index
    %33 = vector.load %arg11[%c0_26, %c0_27] : memref<1x8xf32, #tpu.memory_space<vmem>>, vector<1x8xf32>
    %cst_28 = arith.constant dense<0.000000e+00> : vector<1x128xf32>
    %34 = tpu.matmul %33, %30, %cst_28 {dimension_numbers = #tpu.dot_dimension_numbers<[1], [0], [0], [1], [0, 0, 1, 1], [], []>} : vector<1x8xf32>, vector<8x128xf32>, vector<1x128xf32> -> vector<1x128xf32>
    %35 = arith.addf %32, %34 : vector<1x128xf32>
    %c0_29 = arith.constant 0 : index
    %c0_30 = arith.constant 0 : index
    %36 = vector.load %arg12[%c0_29, %c0_30] : memref<1x1xf32, #tpu.memory_space<vmem>>, vector<1x1xf32>
    %37 = vector.broadcast %36 : vector<1x1xf32> to vector<1x128xf32>
    %38 = arith.addf %35, %37 : vector<1x128xf32>
    %39 = arith.negf %38 : vector<1x128xf32>
    %40 = math.exp %39 : vector<1x128xf32>
    %cst_31 = arith.constant 1.000000e+00 : f32
    %41 = vector.broadcast %cst_31 : f32 to vector<1x128xf32>
    %42 = arith.addf %41, %40 : vector<1x128xf32>
    %43 = arith.divf %41, %42 : vector<1x128xf32>
    %c0_32 = arith.constant 0 : index
    %c0_33 = arith.constant 0 : index
    %44 = vector.load %arg13[%c0_32, %c0_33] : memref<1x128xf32, #tpu.memory_space<vmem>>, vector<1x128xf32>
    tpu.vector_store %arg13[%c0_32, %c0_33], %43 {strides = array<i32>} : memref<1x128xf32, #tpu.memory_space<vmem>>, vector<1x128xf32>,
    return
  }
  func.func @transform_0(%arg0: i32) -> (i32, i32) {
    %c0_i32 = arith.constant 0 : i32
    %c0_i32_0 = arith.constant 0 : i32
    return %c0_i32, %arg0 : i32, i32
  }
  func.func @transform_1(%arg0: i32) -> (i32, i32) {
    %c0_i32 = arith.constant 0 : i32
    %c0_i32_0 = arith.constant 0 : i32
    return %c0_i32, %arg0 : i32, i32
  }
  func.func @transform_2(%arg0: i32) -> (i32, i32) {
    %c0_i32 = arith.constant 0 : i32
    %c0_i32_0 = arith.constant 0 : i32
    %c0_i32_1 = arith.constant 0 : i32
    return %c0_i32, %c0_i32_0 : i32, i32
  }
  func.func @transform_3(%arg0: i32) -> (i32, i32) {
    %c0_i32 = arith.constant 0 : i32
    %c0_i32_0 = arith.constant 0 : i32
    %c0_i32_1 = arith.constant 0 : i32
    return %c0_i32, %c0_i32_0 : i32, i32
  }
  func.func @transform_4(%arg0: i32) -> (i32, i32) {
    %c0_i32 = arith.constant 0 : i32
    %c0_i32_0 = arith.constant 0 : i32
    %c0_i32_1 = arith.constant 0 : i32
    return %c0_i32, %c0_i32_0 : i32, i32
  }
  func.func @transform_5(%arg0: i32) -> (i32, i32) {
    %c0_i32 = arith.constant 0 : i32
    %c0_i32_0 = arith.constant 0 : i32
    %c0_i32_1 = arith.constant 0 : i32
    return %c0_i32, %c0_i32_0 : i32, i32
  }
  func.func @transform_6(%arg0: i32) -> (i32, i32) {
    %c0_i32 = arith.constant 0 : i32
    %c0_i32_0 = arith.constant 0 : i32
    %c0_i32_1 = arith.constant 0 : i32
    return %c0_i32, %c0_i32_0 : i32, i32
  }
  func.func @transform_7(%arg0: i32) -> (i32, i32) {
    %c0_i32 = arith.constant 0 : i32
    %c0_i32_0 = arith.constant 0 : i32
    %c0_i32_1 = arith.constant 0 : i32
    return %c0_i32, %c0_i32_0 : i32, i32
  }
  func.func @transform_8(%arg0: i32) -> (i32, i32) {
    %c0_i32 = arith.constant 0 : i32
    %c0_i32_0 = arith.constant 0 : i32
    %c0_i32_1 = arith.constant 0 : i32
    return %c0_i32, %c0_i32_0 : i32, i32
  }
  func.func @transform_9(%arg0: i32) -> (i32, i32) {
    %c0_i32 = arith.constant 0 : i32
    %c0_i32_0 = arith.constant 0 : i32
    %c0_i32_1 = arith.constant 0 : i32
    return %c0_i32, %c0_i32_0 : i32, i32
  }
  func.func @transform_10(%arg0: i32) -> (i32, i32) {
    %c0_i32 = arith.constant 0 : i32
    %c0_i32_0 = arith.constant 0 : i32
    %c0_i32_1 = arith.constant 0 : i32
    return %c0_i32, %c0_i32_0 : i32, i32
  }
  func.func @transform_11(%arg0: i32) -> (i32, i32) {
    %c0_i32 = arith.constant 0 : i32
    %c0_i32_0 = arith.constant 0 : i32
    %c0_i32_1 = arith.constant 0 : i32
    return %c0_i32, %c0_i32_0 : i32, i32
  }
  func.func @transform_12(%arg0: i32) -> (i32, i32) {
    %c0_i32 = arith.constant 0 : i32
    %c0_i32_0 = arith.constant 0 : i32
    return %c0_i32, %arg0 : i32, i32
  }
}

</mosaic_0001>

<llo_original>
// kernel: _lambda_.1
$region0: #{_lambda_.1}
  #allocation0 [shape = 'u32[]', space=smem, size = 0x4, offset = 0x4, fixed_abs, tag = 'smem constant byte address 0x4 - core index']
  #allocation1 [shape = 'u32[144,128]{1,0:T(1,128)}', space=vmem, size = 0x12000, scoped, tag = 'internal scratch']
  #allocation2 [shape = 'f32[1,1]{1,0:T(1,128)S(1)}', space=vmem, size = 0x200, scoped, tag = 'scoped memory for _lambda_.1']
  %s0 = inlined_call_operand.vmem [shape: f32[16,128], index: 0, kind: input, shape index: {}]
  %s1 = inlined_call_operand.vmem [shape: f32[16,128], index: 1, kind: input, shape index: {}]
  %s2 = inlined_call_operand.vmem [shape: f32[32,8], index: 2, kind: input, shape index: {}]
  %s3 = inlined_call_operand.vmem [shape: f32[32,8], index: 3, kind: input, shape index: {}]
  %s4 = inlined_call_operand.vmem [shape: f32[32,1], index: 4, kind: input, shape index: {}]
  %s5 = inlined_call_operand.vmem [shape: f32[16,32], index: 5, kind: input, shape index: {}]
  %s6 = inlined_call_operand.vmem [shape: f32[16,1], index: 6, kind: input, shape index: {}]
  %s7 = inlined_call_operand.vmem [shape: f32[8,16], index: 7, kind: input, shape index: {}]
  %s8 = inlined_call_operand.vmem [shape: f32[8,1], index: 8, kind: input, shape index: {}]
  %s9 = inlined_call_operand.vmem [shape: f32[1,8], index: 9, kind: input, shape index: {}]
  %s10 = inlined_call_operand.vmem [shape: f32[1,8], index: 10, kind: input, shape index: {}]
  %s11 = inlined_call_operand.<no memory space> [shape: f32[1,1], index: 11, kind: input, shape index: {}]
  %s12 = inlined_call_operand.vmem [shape: f32[1,128], index: 12, kind: output, shape index: {}]
  %s13 = sld [smem:[#allocation0]]
  $region58: #{_lambda_.1} parent=0
    _
  %s15 = ssub.s32 1, %s13
  %s16 = scalar_select 0, %s15, %s13
  %v17 = vstv %s11
  %18 = vst [vmem:[#allocation2] sm:$0x1] %v17
  // Predicated region
  $region2: #{_lambda_.1} parent=0 // pred_check
    _
  $region3: #{_lambda_.1} parent=0 // pred_check_branch
    %20 = sbr.rel (0) target = $region5
  $region4: #{_lambda_.1} parent=0 // pred_region
    _
  $region5: #{_lambda_.1} parent=0 // pred_fallthru
    _
  // Predicated region
  $region6: #{_lambda_.1} parent=0 // pred_check
    _
  $region7: #{_lambda_.1} parent=0 // pred_check_branch
    %22 = sbr.rel (0) target = $region9
  $region8: #{_lambda_.1} parent=0 // pred_region
    _
  $region9: #{_lambda_.1} parent=0 // pred_fallthru
    _
  // Predicated region
  $region10: #{_lambda_.1} parent=0 // pred_check
    _
  $region11: #{_lambda_.1} parent=0 // pred_check_branch
    %24 = sbr.rel (0) target = $region13
  $region12: #{_lambda_.1} parent=0 // pred_region
    _
  $region13: #{_lambda_.1} parent=0 // pred_fallthru
    _
  // Predicated region
  $region14: #{_lambda_.1} parent=0 // pred_check
    _
  $region15: #{_lambda_.1} parent=0 // pred_check_branch
    %26 = sbr.rel (0) target = $region17
  $region16: #{_lambda_.1} parent=0 // pred_region
    _
  $region17: #{_lambda_.1} parent=0 // pred_fallthru
    _
  // Predicated region
  $region18: #{_lambda_.1} parent=0 // pred_check
    _
  $region19: #{_lambda_.1} parent=0 // pred_check_branch
    %28 = sbr.rel (0) target = $region21
  $region20: #{_lambda_.1} parent=0 // pred_region
    _
  $region21: #{_lambda_.1} parent=0 // pred_fallthru
    _
  // Predicated region
  $region22: #{_lambda_.1} parent=0 // pred_check
    _
  $region23: #{_lambda_.1} parent=0 // pred_check_branch
    %30 = sbr.rel (0) target = $region25
  $region24: #{_lambda_.1} parent=0 // pred_region
    _
  $region25: #{_lambda_.1} parent=0 // pred_fallthru
    _
  // Predicated region
  $region26: #{_lambda_.1} parent=0 // pred_check
    _
  $region27: #{_lambda_.1} parent=0 // pred_check_branch
    %32 = sbr.rel (0) target = $region29
  $region28: #{_lambda_.1} parent=0 // pred_region
    _
  $region29: #{_lambda_.1} parent=0 // pred_fallthru
    _
  // Predicated region
  $region30: #{_lambda_.1} parent=0 // pred_check
    _
  $region31: #{_lambda_.1} parent=0 // pred_check_branch
    %34 = sbr.rel (0) target = $region33
  $region32: #{_lambda_.1} parent=0 // pred_region
    _
  $region33: #{_lambda_.1} parent=0 // pred_fallthru
    _
  // Predicated region
  $region34: #{_lambda_.1} parent=0 // pred_check
    _
  $region35: #{_lambda_.1} parent=0 // pred_check_branch
    %36 = sbr.rel (0) target = $region37
  $region36: #{_lambda_.1} parent=0 // pred_region
    _
  $region37: #{_lambda_.1} parent=0 // pred_fallthru
    _
  // Predicated region
  $region38: #{_lambda_.1} parent=0 // pred_check
    _
  $region39: #{_lambda_.1} parent=0 // pred_check_branch
    %38 = sbr.rel (0) target = $region41
  $region40: #{_lambda_.1} parent=0 // pred_region
    _
  $region41: #{_lambda_.1} parent=0 // pred_fallthru
    _
  // Predicated region
  $region42: #{_lambda_.1} parent=0 // pred_check
    _
  $region43: #{_lambda_.1} parent=0 // pred_check_branch
    %40 = sbr.rel (0) target = $region45
  $region44: #{_lambda_.1} parent=0 // pred_region
    _
  $region45: #{_lambda_.1} parent=0 // pred_fallthru
    _
  // Predicated region
  $region46: #{_lambda_.1} parent=0 // pred_check
    _
  $region47: #{_lambda_.1} parent=0 // pred_check_branch
    %42 = sbr.rel (0) target = $region49
  $region48: #{_lambda_.1} parent=0 // pred_region
    _
  $region49: #{_lambda_.1} parent=0 // pred_fallthru
    _
  %v43 = vld [vmem:[%s0] sm:$0xff]
  %v44 = vld [vmem:[%s0 + $0x8] sm:$0xff]
  %v45 = vld [vmem:[%s1] sm:$0xff]
  %v46 = vld [vmem:[%s1 + $0x8] sm:$0xff]
  %v47 = vld [vmem:[%s2] sm:$0xff]
  %v48 = vld [vmem:[%s2 + $0x8] sm:$0xff]
  %v49 = vld [vmem:[%s2 + $0x10] sm:$0xff]
  %v50 = vld [vmem:[%s2 + $0x18] sm:$0xff]
  %v51 = vld [vmem:[%s3] sm:$0xff]
  %v52 = vld [vmem:[%s3 + $0x8] sm:$0xff]
  %v53 = vld [vmem:[%s3 + $0x10] sm:$0xff]
  %v54 = vld [vmem:[%s3 + $0x18] sm:$0xff]
  %vm55 = vcmask 64512
  %v57 = vsel %vm55, %v51, 0
  %v60 = vsel %vm55, %v52, 0
  %v63 = vsel %vm55, %v53, 0
  %v66 = vsel %vm55, %v54, 0
  %68 = vmatprep.subr.mxu0 0.0
  %69 = vmatpush1.msra.mxu0 0.0
  %70 = vmatprep.subr.mxu0 0.0
  %71 = vmatpush1.msra.mxu0 0.0
  %72 = vmatprep.subr.mxu0 0.0
  %73 = vmatpush1.msra.mxu0 0.0
  %74 = vmatprep.subr.mxu0 0.0
  %75 = vmatpush1.msra.mxu0 0.0
  %76 = vmatprep.subr.mxu0 0.0
  %77 = vmatpush1.msra.mxu0 0.0
  %78 = vmatprep.subr.mxu0 0.0
  %79 = vmatpush1.msra.mxu0 0.0
  %80 = vmatprep.subr.mxu0 0.0
  %81 = vmatpush1.msra.mxu0 0.0
  %82 = vmatprep.subr.mxu0 0.0
  %83 = vmatpush1.msra.mxu0 0.0
  %84 = vmatprep.subr.mxu0 0.0
  %85 = vmatpush1.msra.mxu0 0.0
  %86 = vmatprep.subr.mxu0 0.0
  %87 = vmatpush1.msra.mxu0 0.0
  %88 = vmatprep.subr.mxu0 0.0
  %89 = vmatpush1.msra.mxu0 0.0
  %90 = vmatprep.subr.mxu0 0.0
  %91 = vmatpush1.msra.mxu0 0.0
  %92 = vmatprep.subr.mxu0 0.0
  %93 = vmatpush1.msra.mxu0 0.0
  %94 = vmatprep.subr.mxu0 0.0
  %95 = vmatpush1.msra.mxu0 0.0
  %96 = vmatprep.subr.mxu0 0.0
  %97 = vmatpush1.msra.mxu0 0.0
  %98 = vmatprep.subr.mxu0 0.0
  %99 = vmatpush1.msra.mxu0 %v45
  %100 = vmatprep.subr.mxu0 0.0
  %101 = vmatpush2.msra.mxu0 0.0
  %102 = vmatprep.subr.mxu0 0.0
  %103 = vmatpush2.msra.mxu0 0.0
  %104 = vmatprep.subr.mxu0 0.0
  %105 = vmatpush2.msra.mxu0 0.0
  %106 = vmatprep.subr.mxu0 0.0
  %107 = vmatpush2.msra.mxu0 0.0
  %108 = vmatprep.subr.mxu0 0.0
  %109 = vmatpush2.msra.mxu0 0.0
  %110 = vmatprep.subr.mxu0 0.0
  %111 = vmatpush2.msra.mxu0 0.0
  %112 = vmatprep.subr.mxu0 0.0
  %113 = vmatpush2.msra.mxu0 0.0
  %114 = vmatprep.subr.mxu0 0.0
  %115 = vmatpush2.msra.mxu0 0.0
  %116 = vmatprep.subr.mxu0 0.0
  %117 = vmatpush2.msra.mxu0 0.0
  %118 = vmatprep.subr.mxu0 0.0
  %119 = vmatpush2.msra.mxu0 0.0
  %120 = vmatprep.subr.mxu0 0.0
  %121 = vmatpush2.msra.mxu0 0.0
  %122 = vmatprep.subr.mxu0 0.0
  %123 = vmatpush2.msra.mxu0 0.0
  %124 = vmatprep.subr.mxu0 0.0
  %125 = vmatpush2.msra.mxu0 0.0
  %126 = vmatprep.subr.mxu0 0.0
  %127 = vmatpush2.msra.mxu0 0.0
  %128 = vmatprep.subr.mxu0 0.0
  %129 = vmatpush2.msra.mxu0 0.0
  %130 = vmatprep.subr.mxu0 0.0
  %131 = vmatpush2.msra.mxu0 0.0
  %132 = vmatprep.mubr.f32.mxu0 0.0
  %133 = vmatmul.mubr.f32.gmra.mxu0 %v57
  %v134 = vpop.f32.mrf.mxu0
  %v135 = vadd.f32 0.0, %v134
  %v136 = vpop.f32.mrf.mxu0
  %137 = vmatprep.mubr.f32.mxu0 0.0
  %138 = vmatmul.mubr.f32.gmra.mxu0 %v60
  %v139 = vpop.f32.mrf.mxu0
  %v140 = vadd.f32 0.0, %v139
  %v141 = vpop.f32.mrf.mxu0
  %142 = vmatprep.mubr.f32.mxu0 0.0
  %143 = vmatmul.mubr.f32.gmra.mxu0 %v63
  %v144 = vpop.f32.mrf.mxu0
  %v145 = vadd.f32 0.0, %v144
  %v146 = vpop.f32.mrf.mxu0
  %147 = vmatprep.mubr.f32.mxu0 0.0
  %148 = vmatmul.mubr.f32.gmra.mxu0 %v66
  %v149 = vpop.f32.mrf.mxu0
  %v150 = vadd.f32 0.0, %v149
  %v151 = vpop.f32.mrf.mxu0
  %152 = vdwg.mxu0
  %v154 = vsel %vm55, %v47, 0
  %v157 = vsel %vm55, %v48, 0
  %v160 = vsel %vm55, %v49, 0
  %v163 = vsel %vm55, %v50, 0
  %165 = vmatprep.subr.mxu0 0.0
  %166 = vmatpush1.msra.mxu0 0.0
  %167 = vmatprep.subr.mxu0 0.0
  %168 = vmatpush1.msra.mxu0 0.0
  %169 = vmatprep.subr.mxu0 0.0
  %170 = vmatpush1.msra.mxu0 0.0
  %171 = vmatprep.subr.mxu0 0.0
  %172 = vmatpush1.msra.mxu0 0.0
  %173 = vmatprep.subr.mxu0 0.0
  %174 = vmatpush1.msra.mxu0 0.0
  %175 = vmatprep.subr.mxu0 0.0
  %176 = vmatpush1.msra.mxu0 0.0
  %177 = vmatprep.subr.mxu0 0.0
  %178 = vmatpush1.msra.mxu0 0.0
  %179 = vmatprep.subr.mxu0 0.0
  %180 = vmatpush1.msra.mxu0 0.0
  %181 = vmatprep.subr.mxu0 0.0
  %182 = vmatpush1.msra.mxu0 0.0
  %183 = vmatprep.subr.mxu0 0.0
  %184 = vmatpush1.msra.mxu0 0.0
  %185 = vmatprep.subr.mxu0 0.0
  %186 = vmatpush1.msra.mxu0 0.0
  %187 = vmatprep.subr.mxu0 0.0
  %188 = vmatpush1.msra.mxu0 0.0
  %189 = vmatprep.subr.mxu0 0.0
  %190 = vmatpush1.msra.mxu0 0.0
  %191 = vmatprep.subr.mxu0 0.0
  %192 = vmatpush1.msra.mxu0 0.0
  %193 = vmatprep.subr.mxu0 0.0
  %194 = vmatpush1.msra.mxu0 0.0
  %195 = vmatprep.subr.mxu0 0.0
  %196 = vmatpush1.msra.mxu0 %v43
  %197 = vmatprep.subr.mxu0 0.0
  %198 = vmatpush2.msra.mxu0 0.0
  %199 = vmatprep.subr.mxu0 0.0
  %200 = vmatpush2.msra.mxu0 0.0
  %201 = vmatprep.subr.mxu0 0.0
  %202 = vmatpush2.msra.mxu0 0.0
  %203 = vmatprep.subr.mxu0 0.0
  %204 = vmatpush2.msra.mxu0 0.0
  %205 = vmatprep.subr.mxu0 0.0
  %206 = vmatpush2.msra.mxu0 0.0
  %207 = vmatprep.subr.mxu0 0.0
  %208 = vmatpush2.msra.mxu0 0.0
  %209 = vmatprep.subr.mxu0 0.0
  %210 = vmatpush2.msra.mxu0 0.0
  %211 = vmatprep.subr.mxu0 0.0
  %212 = vmatpush2.msra.mxu0 0.0
  %213 = vmatprep.subr.mxu0 0.0
  %214 = vmatpush2.msra.mxu0 0.0
  %215 = vmatprep.subr.mxu0 0.0
  %216 = vmatpush2.msra.mxu0 0.0
  %217 = vmatprep.subr.mxu0 0.0
  %218 = vmatpush2.msra.mxu0 0.0
  %219 = vmatprep.subr.mxu0 0.0
  %220 = vmatpush2.msra.mxu0 0.0
  %221 = vmatprep.subr.mxu0 0.0
  %222 = vmatpush2.msra.mxu0 0.0
  %223 = vmatprep.subr.mxu0 0.0
  %224 = vmatpush2.msra.mxu0 0.0
  %225 = vmatprep.subr.mxu0 0.0
  %226 = vmatpush2.msra.mxu0 0.0
  %227 = vmatprep.subr.mxu0 0.0
  %228 = vmatpush2.msra.mxu0 0.0
  %229 = vmatprep.mubr.f32.mxu0 0.0
  %230 = vmatmul.mubr.f32.gmra.mxu0 %v154
  %v231 = vpop.f32.mrf.mxu0
  %v232 = vadd.f32 %v135, %v231
  %v233 = vpop.f32.mrf.mxu0
  %234 = vmatprep.mubr.f32.mxu0 0.0
  %235 = vmatmul.mubr.f32.gmra.mxu0 %v157
  %v236 = vpop.f32.mrf.mxu0
  %v237 = vadd.f32 %v140, %v236
  %v238 = vpop.f32.mrf.mxu0
  %239 = vmatprep.mubr.f32.mxu0 0.0
  %240 = vmatmul.mubr.f32.gmra.mxu0 %v160
  %v241 = vpop.f32.mrf.mxu0
  %v242 = vadd.f32 %v145, %v241
  %v243 = vpop.f32.mrf.mxu0
  %244 = vmatprep.mubr.f32.mxu0 0.0
  %245 = vmatmul.mubr.f32.gmra.mxu0 %v163
  %v246 = vpop.f32.mrf.mxu0
  %v247 = vadd.f32 %v150, %v246
  %v248 = vpop.f32.mrf.mxu0
  %249 = vdwg.mxu0
  %v250 = vld [vmem:[%s4] sm:$0xff]
  %v251 = vld [vmem:[%s4 + $0x8] sm:$0xff]
  %v252 = vld [vmem:[%s4 + $0x10] sm:$0xff]
  %v253 = vld [vmem:[%s4 + $0x18] sm:$0xff]
  %255 = vset.pattern.permute.xlu0 0
  %256 = vperm.xlu0 %255, %v250
  %v257 = vpop.permute.xlu0 %256
  %260 = vset.pattern.permute.xlu0 0
  %261 = vperm.xlu0 %260, %v251
  %v262 = vpop.permute.xlu0 %261
  %265 = vset.pattern.permute.xlu0 0
  %266 = vperm.xlu0 %265, %v252
  %v267 = vpop.permute.xlu0 %266
  %270 = vset.pattern.permute.xlu0 0
  %271 = vperm.xlu0 %270, %v253
  %v272 = vpop.permute.xlu0 %271
  %v274 = vadd.f32 %v232, %v257
  %v275 = vadd.f32 %v237, %v262
  %v276 = vadd.f32 %v242, %v267
  %v277 = vadd.f32 %v247, %v272
  %v278 = vmax.f32 %v274, 0.0
  %v279 = vmax.f32 %v275, 0.0
  %v280 = vmax.f32 %v276, 0.0
  %v281 = vmax.f32 %v277, 0.0
  %v282 = vld [vmem:[%s5] sm:$0xff]
  %v283 = vld [vmem:[%s5 + $0x8] sm:$0xff]
  %v284 = vld [vmem:[%s6] sm:$0xff]
  %v285 = vld [vmem:[%s6 + $0x8] sm:$0xff]
  %287 = vset.pattern.permute.xlu0 0
  %288 = vperm.xlu0 %287, %v284
  %v289 = vpop.permute.xlu0 %288
  %292 = vset.pattern.permute.xlu0 0
  %293 = vperm.xlu0 %292, %v285
  %v294 = vpop.permute.xlu0 %293
  %vm296 = vcmask 261120
  %v298 = vsel %vm296, %v282, 0
  %v301 = vsel %vm296, %v283, 0
  %303 = vmatprep.subr.mxu0 0.0
  %304 = vmatpush1.msra.mxu0 0.0
  %305 = vmatprep.subr.mxu0 0.0
  %306 = vmatpush1.msra.mxu0 0.0
  %307 = vmatprep.subr.mxu0 0.0
  %308 = vmatpush1.msra.mxu0 0.0
  %309 = vmatprep.subr.mxu0 0.0
  %310 = vmatpush1.msra.mxu0 0.0
  %311 = vmatprep.subr.mxu0 0.0
  %312 = vmatpush1.msra.mxu0 0.0
  %313 = vmatprep.subr.mxu0 0.0
  %314 = vmatpush1.msra.mxu0 0.0
  %315 = vmatprep.subr.mxu0 0.0
  %316 = vmatpush1.msra.mxu0 0.0
  %317 = vmatprep.subr.mxu0 0.0
  %318 = vmatpush1.msra.mxu0 0.0
  %319 = vmatprep.subr.mxu0 0.0
  %320 = vmatpush1.msra.mxu0 0.0
  %321 = vmatprep.subr.mxu0 0.0
  %322 = vmatpush1.msra.mxu0 0.0
  %323 = vmatprep.subr.mxu0 0.0
  %324 = vmatpush1.msra.mxu0 0.0
  %325 = vmatprep.subr.mxu0 0.0
  %326 = vmatpush1.msra.mxu0 0.0
  %327 = vmatprep.subr.mxu0 0.0
  %328 = vmatpush1.msra.mxu0 %v281
  %329 = vmatprep.subr.mxu0 0.0
  %330 = vmatpush1.msra.mxu0 %v280
  %331 = vmatprep.subr.mxu0 0.0
  %332 = vmatpush1.msra.mxu0 %v279
  %333 = vmatprep.subr.mxu0 0.0
  %334 = vmatpush1.msra.mxu0 %v278
  %335 = vmatprep.subr.mxu0 0.0
  %336 = vmatpush2.msra.mxu0 0.0
  %337 = vmatprep.subr.mxu0 0.0
  %338 = vmatpush2.msra.mxu0 0.0
  %339 = vmatprep.subr.mxu0 0.0
  %340 = vmatpush2.msra.mxu0 0.0
  %341 = vmatprep.subr.mxu0 0.0
  %342 = vmatpush2.msra.mxu0 0.0
  %343 = vmatprep.subr.mxu0 0.0
  %344 = vmatpush2.msra.mxu0 0.0
  %345 = vmatprep.subr.mxu0 0.0
  %346 = vmatpush2.msra.mxu0 0.0
  %347 = vmatprep.subr.mxu0 0.0
  %348 = vmatpush2.msra.mxu0 0.0
  %349 = vmatprep.subr.mxu0 0.0
  %350 = vmatpush2.msra.mxu0 0.0
  %351 = vmatprep.subr.mxu0 0.0
  %352 = vmatpush2.msra.mxu0 0.0
  %353 = vmatprep.subr.mxu0 0.0
  %354 = vmatpush2.msra.mxu0 0.0
  %355 = vmatprep.subr.mxu0 0.0
  %356 = vmatpush2.msra.mxu0 0.0
  %357 = vmatprep.subr.mxu0 0.0
  %358 = vmatpush2.msra.mxu0 0.0
  %359 = vmatprep.subr.mxu0 0.0
  %360 = vmatpush2.msra.mxu0 0.0
  %361 = vmatprep.subr.mxu0 0.0
  %362 = vmatpush2.msra.mxu0 0.0
  %363 = vmatprep.subr.mxu0 0.0
  %364 = vmatpush2.msra.mxu0 0.0
  %365 = vmatprep.subr.mxu0 0.0
  %366 = vmatpush2.msra.mxu0 0.0
  %367 = vmatprep.mubr.f32.mxu0 0.0
  %368 = vmatmul.mubr.f32.gmra.mxu0 %v298
  %v369 = vpop.f32.mrf.mxu0
  %v370 = vadd.f32 %v289, %v369
  %v371 = vpop.f32.mrf.mxu0
  %372 = vmatprep.mubr.f32.mxu0 0.0
  %373 = vmatmul.mubr.f32.gmra.mxu0 %v301
  %v374 = vpop.f32.mrf.mxu0
  %v375 = vadd.f32 %v294, %v374
  %v376 = vpop.f32.mrf.mxu0
  %377 = vdwg.mxu0
  %v378 = vmax.f32 %v370, 0.0
  %v379 = vmax.f32 %v375, 0.0
  %v380 = vld [vmem:[%s7] sm:$0xff]
  %v381 = vld [vmem:[%s8] sm:$0xff]
  %383 = vset.pattern.permute.xlu0 0
  %384 = vperm.xlu0 %383, %v381
  %v385 = vpop.permute.xlu0 %384
  %vm387 = vcmask 130048
  %v389 = vsel %vm387, %v380, 0
  %391 = vmatprep.subr.mxu0 0.0
  %392 = vmatpush1.msra.mxu0 0.0
  %393 = vmatprep.subr.mxu0 0.0
  %394 = vmatpush1.msra.mxu0 0.0
  %395 = vmatprep.subr.mxu0 0.0
  %396 = vmatpush1.msra.mxu0 0.0
  %397 = vmatprep.subr.mxu0 0.0
  %398 = vmatpush1.msra.mxu0 0.0
  %399 = vmatprep.subr.mxu0 0.0
  %400 = vmatpush1.msra.mxu0 0.0
  %401 = vmatprep.subr.mxu0 0.0
  %402 = vmatpush1.msra.mxu0 0.0
  %403 = vmatprep.subr.mxu0 0.0
  %404 = vmatpush1.msra.mxu0 0.0
  %405 = vmatprep.subr.mxu0 0.0
  %406 = vmatpush1.msra.mxu0 0.0
  %407 = vmatprep.subr.mxu0 0.0
  %408 = vmatpush1.msra.mxu0 0.0
  %409 = vmatprep.subr.mxu0 0.0
  %410 = vmatpush1.msra.mxu0 0.0
  %411 = vmatprep.subr.mxu0 0.0
  %412 = vmatpush1.msra.mxu0 0.0
  %413 = vmatprep.subr.mxu0 0.0
  %414 = vmatpush1.msra.mxu0 0.0
  %415 = vmatprep.subr.mxu0 0.0
  %416 = vmatpush1.msra.mxu0 0.0
  %417 = vmatprep.subr.mxu0 0.0
  %418 = vmatpush1.msra.mxu0 0.0
  %419 = vmatprep.subr.mxu0 0.0
  %420 = vmatpush1.msra.mxu0 %v379
  %421 = vmatprep.subr.mxu0 0.0
  %422 = vmatpush1.msra.mxu0 %v378
  %423 = vmatprep.subr.mxu0 0.0
  %424 = vmatpush2.msra.mxu0 0.0
  %425 = vmatprep.subr.mxu0 0.0
  %426 = vmatpush2.msra.mxu0 0.0
  %427 = vmatprep.subr.mxu0 0.0
  %428 = vmatpush2.msra.mxu0 0.0
  %429 = vmatprep.subr.mxu0 0.0
  %430 = vmatpush2.msra.mxu0 0.0
  %431 = vmatprep.subr.mxu0 0.0
  %432 = vmatpush2.msra.mxu0 0.0
  %433 = vmatprep.subr.mxu0 0.0
  %434 = vmatpush2.msra.mxu0 0.0
  %435 = vmatprep.subr.mxu0 0.0
  %436 = vmatpush2.msra.mxu0 0.0
  %437 = vmatprep.subr.mxu0 0.0
  %438 = vmatpush2.msra.mxu0 0.0
  %439 = vmatprep.subr.mxu0 0.0
  %440 = vmatpush2.msra.mxu0 0.0
  %441 = vmatprep.subr.mxu0 0.0
  %442 = vmatpush2.msra.mxu0 0.0
  %443 = vmatprep.subr.mxu0 0.0
  %444 = vmatpush2.msra.mxu0 0.0
  %445 = vmatprep.subr.mxu0 0.0
  %446 = vmatpush2.msra.mxu0 0.0
  %447 = vmatprep.subr.mxu0 0.0
  %448 = vmatpush2.msra.mxu0 0.0
  %449 = vmatprep.subr.mxu0 0.0
  %450 = vmatpush2.msra.mxu0 0.0
  %451 = vmatprep.subr.mxu0 0.0
  %452 = vmatpush2.msra.mxu0 0.0
  %453 = vmatprep.subr.mxu0 0.0
  %454 = vmatpush2.msra.mxu0 0.0
  %455 = vmatprep.mubr.f32.mxu0 0.0
  %456 = vmatmul.mubr.f32.gmra.mxu0 %v389
  %v457 = vpop.f32.mrf.mxu0
  %v458 = vadd.f32 %v385, %v457
  %v459 = vpop.f32.mrf.mxu0
  %460 = vdwg.mxu0
  %v461 = vmax.f32 %v458, 0.0
  %v462 = vmul.f32 %v44, %v46
  %v463 = vld [vmem:[%s9] sm:$0x1]
  %v464 = vld [vmem:[%s10] sm:$0x1]
  %v466 = vsel %vm55, %v464, 0
  %468 = vmatprep.subr.mxu0 0.0
  %469 = vmatpush1.msra.mxu0 0.0
  %470 = vmatprep.subr.mxu0 0.0
  %471 = vmatpush1.msra.mxu0 0.0
  %472 = vmatprep.subr.mxu0 0.0
  %473 = vmatpush1.msra.mxu0 0.0
  %474 = vmatprep.subr.mxu0 0.0
  %475 = vmatpush1.msra.mxu0 0.0
  %476 = vmatprep.subr.mxu0 0.0
  %477 = vmatpush1.msra.mxu0 0.0
  %478 = vmatprep.subr.mxu0 0.0
  %479 = vmatpush1.msra.mxu0 0.0
  %480 = vmatprep.subr.mxu0 0.0
  %481 = vmatpush1.msra.mxu0 0.0
  %482 = vmatprep.subr.mxu0 0.0
  %483 = vmatpush1.msra.mxu0 0.0
  %484 = vmatprep.subr.mxu0 0.0
  %485 = vmatpush1.msra.mxu0 0.0
  %486 = vmatprep.subr.mxu0 0.0
  %487 = vmatpush1.msra.mxu0 0.0
  %488 = vmatprep.subr.mxu0 0.0
  %489 = vmatpush1.msra.mxu0 0.0
  %490 = vmatprep.subr.mxu0 0.0
  %491 = vmatpush1.msra.mxu0 0.0
  %492 = vmatprep.subr.mxu0 0.0
  %493 = vmatpush1.msra.mxu0 0.0
  %494 = vmatprep.subr.mxu0 0.0
  %495 = vmatpush1.msra.mxu0 0.0
  %496 = vmatprep.subr.mxu0 0.0
  %497 = vmatpush1.msra.mxu0 0.0
  %498 = vmatprep.subr.mxu0 0.0
  %499 = vmatpush1.msra.mxu0 %v462
  %500 = vmatprep.subr.mxu0 0.0
  %501 = vmatpush2.msra.mxu0 0.0
  %502 = vmatprep.subr.mxu0 0.0
  %503 = vmatpush2.msra.mxu0 0.0
  %504 = vmatprep.subr.mxu0 0.0
  %505 = vmatpush2.msra.mxu0 0.0
  %506 = vmatprep.subr.mxu0 0.0
  %507 = vmatpush2.msra.mxu0 0.0
  %508 = vmatprep.subr.mxu0 0.0
  %509 = vmatpush2.msra.mxu0 0.0
  %510 = vmatprep.subr.mxu0 0.0
  %511 = vmatpush2.msra.mxu0 0.0
  %512 = vmatprep.subr.mxu0 0.0
  %513 = vmatpush2.msra.mxu0 0.0
  %514 = vmatprep.subr.mxu0 0.0
  %515 = vmatpush2.msra.mxu0 0.0
  %516 = vmatprep.subr.mxu0 0.0
  %517 = vmatpush2.msra.mxu0 0.0
  %518 = vmatprep.subr.mxu0 0.0
  %519 = vmatpush2.msra.mxu0 0.0
  %520 = vmatprep.subr.mxu0 0.0
  %521 = vmatpush2.msra.mxu0 0.0
  %522 = vmatprep.subr.mxu0 0.0
  %523 = vmatpush2.msra.mxu0 0.0
  %524 = vmatprep.subr.mxu0 0.0
  %525 = vmatpush2.msra.mxu0 0.0
  %526 = vmatprep.subr.mxu0 0.0
  %527 = vmatpush2.msra.mxu0 0.0
  %528 = vmatprep.subr.mxu0 0.0
  %529 = vmatpush2.msra.mxu0 0.0
  %530 = vmatprep.subr.mxu0 0.0
  %531 = vmatpush2.msra.mxu0 0.0
  %532 = vmatprep.mubr.f32.mxu0 0.0
  %533 = vmatmul.mubr.f32.gmra.mxu0 %v466
  %v534 = vpop.f32.mrf.mxu0
  %v535 = vadd.f32 0.0, %v534
  %v536 = vpop.f32.mrf.mxu0
  %537 = vdwg.mxu0
  %v539 = vsel %vm55, %v463, 0
  %541 = vmatprep.subr.mxu0 0.0
  %542 = vmatpush1.msra.mxu0 0.0
  %543 = vmatprep.subr.mxu0 0.0
  %544 = vmatpush1.msra.mxu0 0.0
  %545 = vmatprep.subr.mxu0 0.0
  %546 = vmatpush1.msra.mxu0 0.0
  %547 = vmatprep.subr.mxu0 0.0
  %548 = vmatpush1.msra.mxu0 0.0
  %549 = vmatprep.subr.mxu0 0.0
  %550 = vmatpush1.msra.mxu0 0.0
  %551 = vmatprep.subr.mxu0 0.0
  %552 = vmatpush1.msra.mxu0 0.0
  %553 = vmatprep.subr.mxu0 0.0
  %554 = vmatpush1.msra.mxu0 0.0
  %555 = vmatprep.subr.mxu0 0.0
  %556 = vmatpush1.msra.mxu0 0.0
  %557 = vmatprep.subr.mxu0 0.0
  %558 = vmatpush1.msra.mxu0 0.0
  %559 = vmatprep.subr.mxu0 0.0
  %560 = vmatpush1.msra.mxu0 0.0
  %561 = vmatprep.subr.mxu0 0.0
  %562 = vmatpush1.msra.mxu0 0.0
  %563 = vmatprep.subr.mxu0 0.0
  %564 = vmatpush1.msra.mxu0 0.0
  %565 = vmatprep.subr.mxu0 0.0
  %566 = vmatpush1.msra.mxu0 0.0
  %567 = vmatprep.subr.mxu0 0.0
  %568 = vmatpush1.msra.mxu0 0.0
  %569 = vmatprep.subr.mxu0 0.0
  %570 = vmatpush1.msra.mxu0 0.0
  %571 = vmatprep.subr.mxu0 0.0
  %572 = vmatpush1.msra.mxu0 %v461
  %573 = vmatprep.subr.mxu0 0.0
  %574 = vmatpush2.msra.mxu0 0.0
  %575 = vmatprep.subr.mxu0 0.0
  %576 = vmatpush2.msra.mxu0 0.0
  %577 = vmatprep.subr.mxu0 0.0
  %578 = vmatpush2.msra.mxu0 0.0
  %579 = vmatprep.subr.mxu0 0.0
  %580 = vmatpush2.msra.mxu0 0.0
  %581 = vmatprep.subr.mxu0 0.0
  %582 = vmatpush2.msra.mxu0 0.0
  %583 = vmatprep.subr.mxu0 0.0
  %584 = vmatpush2.msra.mxu0 0.0
  %585 = vmatprep.subr.mxu0 0.0
  %586 = vmatpush2.msra.mxu0 0.0
  %587 = vmatprep.subr.mxu0 0.0
  %588 = vmatpush2.msra.mxu0 0.0
  %589 = vmatprep.subr.mxu0 0.0
  %590 = vmatpush2.msra.mxu0 0.0
  %591 = vmatprep.subr.mxu0 0.0
  %592 = vmatpush2.msra.mxu0 0.0
  %593 = vmatprep.subr.mxu0 0.0
  %594 = vmatpush2.msra.mxu0 0.0
  %595 = vmatprep.subr.mxu0 0.0
  %596 = vmatpush2.msra.mxu0 0.0
  %597 = vmatprep.subr.mxu0 0.0
  %598 = vmatpush2.msra.mxu0 0.0
  %599 = vmatprep.subr.mxu0 0.0
  %600 = vmatpush2.msra.mxu0 0.0
  %601 = vmatprep.subr.mxu0 0.0
  %602 = vmatpush2.msra.mxu0 0.0
  %603 = vmatprep.subr.mxu0 0.0
  %604 = vmatpush2.msra.mxu0 0.0
  %605 = vmatprep.mubr.f32.mxu0 0.0
  %606 = vmatmul.mubr.f32.gmra.mxu0 %v539
  %v607 = vpop.f32.mrf.mxu0
  %v608 = vadd.f32 %v535, %v607
  %v609 = vpop.f32.mrf.mxu0
  %610 = vdwg.mxu0
  %v611 = vld [vmem:[#allocation2] sm:$0x1]
  %613 = vset.pattern.permute.xlu0 0
  %614 = vperm.xlu0 %613, %v611
  %v615 = vpop.permute.xlu0 %614
  %v617 = vlaneseq
  %v618 = vshrl.u32 %v617, 7
  %v619 = vsub.s32 0, %v618
  %v620 = vrot.slane %v615, %v619
  %v621 = vadd.f32 %v608, %v620
  %v622 = vxor.u32 %v621, 2147483648
  %v623 = vmul.f32 %v622, 1.442695
  %v624 = vpow.pop %v623
  %v625 = vadd.f32 %v624, 1.0
  %v626 = vrcp.pop %v625
  %v627 = vmul.f32 1.0, %v626
  %628 = vst [vmem:[%s12] sm:$0x1] %v627
  // Predicated region
  $region50: #{_lambda_.1} parent=0 // pred_check
    _
  $region51: #{_lambda_.1} parent=0 // pred_check_branch
    %630 = sbr.rel (0) target = $region53
  $region52: #{_lambda_.1} parent=0 // pred_region
    _
  $region53: #{_lambda_.1} parent=0 // pred_fallthru
    _
  // Predicated region
  $region54: #{_lambda_.1} parent=0 // pred_check
    _
  $region55: #{_lambda_.1} parent=0 // pred_check_branch
    %632 = sbr.rel (0) target = $region57
  $region56: #{_lambda_.1} parent=0 // pred_region
    _
  $region57: #{_lambda_.1} parent=0 // pred_fallthru
    _

</llo_original>
